<compile_context>
chip_gen: v5e
topology: v5e:2x2
jax: 0.10.0
libtpu: 0.0.40
codegen_flags: <defaults>
</compile_context>

<pallas_src>
import math

import jax
import jax.numpy as jnp
from jax import lax
from jax.experimental import pallas as pl
from jax.experimental.pallas import tpu as pltpu


_MIB = 1024 * 1024


def _vmem_block_budget():
    """Generation-aware input-block budget (bytes).

    Keeps 2x (double-buffered) input blocks + output + scratch comfortably under
    every generation's default scoped-VMEM limit (16 MiB v5e, 32 MiB v6e/v7x;
    v7x only has 64 MiB physical VMEM).
    """
    try:
        cap = pltpu.get_tpu_info().vmem_capacity_bytes
    except Exception:
        return 4 * _MIB
    return int(min(6 * _MIB, max(2 * _MIB, cap // 16)))


def _pick_spatial_block(hw, c, itemsize, budget):
    """Largest lane-dense (multiple-of-128) spatial block under `budget` bytes.

    Prefers a block that divides hw exactly; otherwise returns the largest
    multiple-of-128 block under budget (the ragged last grid step is masked
    in-kernel). Never asks for a block larger than the budget allows.
    """
    if c * hw * itemsize <= budget or hw <= 128:
        return hw
    max_blk = (budget // (c * itemsize)) // 128
    max_blk = max(1, min(max_blk, hw // 128)) * 128
    for blk in range(max_blk, 127, -128):
        if hw % blk == 0:
            return blk
    return max_blk  # ragged: cdiv grid + in-kernel masking of the last block


def _mlp_attention(avg_col, max_col, w1_ref, w2_ref):
    """sigmoid(fc2(leaky(fc1(avg))) + fc2(leaky(fc1(max)))) for one sample.

    avg_col / max_col: (C, 1) float32.  Returns (C, 1) float32.
    avg and max are stacked into one (C, 2) rhs so each fc runs as a single
    narrow MXU matmul instead of two degenerate width-1 pushes.
    """
    w1f = w1_ref[...].astype(jnp.float32)                          # (Ch, C)
    w2f = w2_ref[...].astype(jnp.float32)                          # (C, Ch)
    c = avg_col.shape[0]
    col = lax.broadcasted_iota(jnp.int32, (c, 2), 1)
    pooled = jnp.where(col == 0, avg_col, max_col)                 # (C, 2)
    h = jnp.dot(w1f, pooled, preferred_element_type=jnp.float32)   # (Ch, 2)
    h = jnp.where(h >= 0, h, 0.1 * h)                              # LeakyReLU(0.1)
    o = jnp.dot(w2f, h, preferred_element_type=jnp.float32)        # (C, 2)
    logits = jnp.sum(o, axis=1, keepdims=True)                     # avg + max branch
    return 1.0 / (1.0 + jnp.exp(-logits))                          # sigmoid


def _store_broadcast(o_view, attn_col, n_lanes):
    """Write broadcast(attn_col) into o_view[:, :n_lanes] in 128-lane chunks.

    Avoids materialising a (C, n_lanes) temporary (which can be MiBs); only a
    single (C, 128) slab is built, hoisted out of the store loop.
    """
    c = attn_col.shape[0]
    tile = jnp.broadcast_to(attn_col, (c, 128)).astype(o_view.dtype)
    n_full = n_lanes // 128
    if n_full > 0:
        @pl.loop(0, n_full)
        def _(j):
            start = pl.multiple_of(j * 128, 128)
            o_view[:, pl.ds(start, 128)] = tile
    rem = n_lanes % 128
    if rem:
        o_view[:, pl.ds(n_full * 128, rem)] = (
            jnp.broadcast_to(attn_col, (c, rem)).astype(o_view.dtype))


def channel_attention(x, w1, w2, *, block_budget_bytes=None):
    """Pallas forward of ChannelAttention: attention map expanded to x.shape (NCHW)."""
    N, C, H, W = x.shape
    HW = H * W
    Ch = w1.shape[0]
    assert w1.shape == (Ch, C) and w2.shape == (C, Ch)

    itemsize = jnp.dtype(x.dtype).itemsize
    budget = block_budget_bytes if block_budget_bytes is not None else _vmem_block_budget()
    s_blk = _pick_spatial_block(HW, C, itemsize, budget)
    n_s = pl.cdiv(HW, s_blk)
    ragged = (HW % s_blk) != 0
    inv_hw = 1.0 / float(HW)
    x3 = x.reshape(N, C, HW)
    w_bytes = (w1.size + w2.size) * jnp.dtype(w1.dtype).itemsize

    # ------------------- fused single-kernel path -------------------
    # One spatial block per sample and small enough that double-buffered in+out
    # blocks stay well inside every generation's scoped-VMEM default.
    if n_s == 1 and C * HW * max(itemsize, 4) <= budget // 2:
        def fused_kernel(x_ref, w1_ref, w2_ref, o_ref):
            xb = x_ref[0]                                                   # (C, HW)
            sum_col = jnp.sum(xb, axis=1, keepdims=True, dtype=jnp.float32)
            max_col = jnp.max(xb, axis=1, keepdims=True).astype(jnp.float32)
            attn = _mlp_attention(sum_col * inv_hw, max_col, w1_ref, w2_ref)
            _store_broadcast(o_ref.at[0], attn, HW)

        out = pl.pallas_call(
            fused_kernel,
            out_shape=jax.ShapeDtypeStruct((N, C, HW), x.dtype),
            grid_spec=pltpu.PrefetchScalarGridSpec(
                num_scalar_prefetch=0,
                grid=(N,),
                in_specs=[
                    pl.BlockSpec((1, C, HW), lambda n: (n, 0, 0)),
                    pl.BlockSpec((Ch, C), lambda n: (0, 0)),
                    pl.BlockSpec((C, Ch), lambda n: (0, 0)),
                ],
                out_specs=pl.BlockSpec((1, C, HW), lambda n: (n, 0, 0)),
            ),
            compiler_params=pltpu.CompilerParams(
                dimension_semantics=("parallel",)),
            cost_estimate=pl.CostEstimate(
                flops=2 * N * C * HW + 8 * N * C * Ch,
                transcendentals=N * C,
                bytes_accessed=2 * N * C * HW * itemsize + N * w_bytes),
        )(x3, w1, w2)
        return out.reshape(N, C, H, W)

    # ------------------- kernel A: pooling reduction + MLP -------------------
    # TODO(synk): on v7x (2 TensorCores) with N < 2 the spatial reduction could
    # additionally be split across cores (per-core partial sum/max combined
    # before the MLP); kept single-core here for simplicity.
    def pool_mlp_kernel(x_ref, w1_ref, w2_ref, attn_ref, *acc):
        s = pl.program_id(1)

        if n_s == 1:
            xb = x_ref[0]
            sum_col = jnp.sum(xb, axis=1, keepdims=True, dtype=jnp.float32)
            max_col = jnp.max(xb, axis=1, keepdims=True).astype(jnp.float32)
            attn_ref[0] = _mlp_attention(sum_col * inv_hw, max_col, w1_ref, w2_ref)
            return

        sum_acc, max_acc = acc

        @pl.when(s == 0)
        def _():
            sum_acc[...] = jnp.zeros_like(sum_acc)
            max_acc[...] = jnp.full_like(max_acc, -jnp.inf)

        # Deferred cross-lane reduction: pure-VPU add/max of 128-lane chunks into
        # (C, 128) accumulators; the lone XLU lane-reduce runs in the epilogue.
        x_view = x_ref.at[0]                                   # (C, s_blk) view
        n_chunks = s_blk // 128
        if ragged:
            lane_iota = lax.broadcasted_iota(jnp.int32, (C, 128), 1)
            limit = HW - s * s_blk                             # valid lanes this block

        def chunk_body(j, carry):
            sm, mx = carry
            start = pl.multiple_of(j * 128, 128)
            cblk = x_view[:, pl.ds(start, 128)]                # (C, 128), x.dtype
            if ragged:
                ok = (lane_iota + start) < limit
                sm = sm + jnp.where(ok, cblk, jnp.zeros_like(cblk)).astype(jnp.float32)
                mx = jnp.maximum(mx, jnp.where(ok, cblk,
                                               jnp.full_like(cblk, -jnp.inf)))
            else:
                sm = sm + cblk.astype(jnp.float32)
                mx = jnp.maximum(mx, cblk)
            return sm, mx

        sum_v, max_v = lax.fori_loop(0, n_chunks, chunk_body,
                                     (sum_acc[...], max_acc[...]),
                                     unroll=n_chunks <= 8)
        sum_acc[...] = sum_v
        max_acc[...] = max_v

        @pl.when(s == n_s - 1)
        def _():
            sum_col = jnp.sum(sum_acc[...], axis=1, keepdims=True)
            max_col = jnp.max(max_acc[...], axis=1, keepdims=True).astype(jnp.float32)
            attn_ref[0] = _mlp_attention(sum_col * inv_hw, max_col, w1_ref, w2_ref)

    scratch = [] if n_s == 1 else [pltpu.VMEM((C, 128), jnp.float32),
                                   pltpu.VMEM((C, 128), x.dtype)]

    attn = pl.pallas_call(
        pool_mlp_kernel,
        out_shape=jax.ShapeDtypeStruct((N, C, 1), jnp.float32),
        grid_spec=pltpu.PrefetchScalarGridSpec(
            num_scalar_prefetch=0,
            grid=(N, n_s),
            in_specs=[
                pl.BlockSpec((1, C, s_blk), lambda n, s: (n, 0, s)),
                pl.BlockSpec((Ch, C), lambda n, s: (0, 0)),
                pl.BlockSpec((C, Ch), lambda n, s: (0, 0)),
            ],
            out_specs=pl.BlockSpec((1, C, 1), lambda n, s: (n, 0, 0)),
            scratch_shapes=scratch,
        ),
        compiler_params=pltpu.CompilerParams(
            dimension_semantics=("parallel", "arbitrary")),
        cost_estimate=pl.CostEstimate(
            flops=2 * N * C * HW + 8 * N * C * Ch,
            transcendentals=N * C,
            bytes_accessed=N * C * HW * itemsize + N * C * 4 + N * w_bytes),
    )(x3, w1, w2)

    # ------------------- kernel B: broadcast attn over the spatial axis -------------------
    e_blk = _pick_spatial_block(HW, C, itemsize, min(budget, 2 * _MIB))
    n_e = pl.cdiv(HW, e_blk)

    def expand_kernel(attn_ref, o_ref):
        _store_broadcast(o_ref.at[0], attn_ref[0], e_blk)

    out = pl.pallas_call(
        expand_kernel,
        out_shape=jax.ShapeDtypeStruct((N, C, HW), x.dtype),
        grid_spec=pltpu.PrefetchScalarGridSpec(
            num_scalar_prefetch=0,
            grid=(N, n_e),
            in_specs=[pl.BlockSpec((1, C, 1), lambda n, s: (n, 0, 0))],
            out_specs=pl.BlockSpec((1, C, e_blk), lambda n, s: (n, 0, s)),
        ),
        compiler_params=pltpu.CompilerParams(
            dimension_semantics=("parallel", "parallel")),
        cost_estimate=pl.CostEstimate(
            flops=0, transcendentals=0,
            bytes_accessed=N * C * HW * itemsize + N * C * 4),
    )(attn)

    return out.reshape(N, C, H, W)


class ChannelAttention:
    """JAX/Pallas port of the PyTorch ChannelAttention module (NCHW in/out)."""

    def __init__(self, input_channels, ratio=16, key=None, dtype=jnp.float32):
        hidden = input_channels // ratio
        assert hidden >= 1, "input_channels // ratio must be >= 1"
        if key is None:
            key = jax.random.PRNGKey(0)
        k1, k2 = jax.random.split(key)
        # 1x1 convs with bias=False on (N, C, 1, 1) == dense layers over channels.
        b1 = 1.0 / math.sqrt(input_channels)
        b2 = 1.0 / math.sqrt(hidden)
        self.w1 = jax.random.uniform(k1, (hidden, input_channels), dtype, -b1, b1)
        self.w2 = jax.random.uniform(k2, (input_channels, hidden), dtype, -b2, b2)

    def __call__(self, x, **kw):
        return channel_attention(x, self.w1, self.w2, **kw)


def _ref_forward(x, w1, w2):
    """Pure-JAX reference of the PyTorch forward."""
    avg = jnp.mean(x, axis=(2, 3))                             # (N, C)
    mx = jnp.max(x, axis=(2, 3))                               # (N, C)

    def branch(v):
        h = v @ w1.T
        h = jnp.where(h >= 0, h, 0.1 * h)                      # LeakyReLU(0.1)
        return h @ w2.T

    attn = jax.nn.sigmoid(branch(avg) + branch(mx))            # (N, C)
    return jnp.broadcast_to(attn[:, :, None, None], x.shape)


if __name__ == "__main__":
    key = jax.random.PRNGKey(0)
    kx1, kx2, kp1, kp2 = jax.random.split(key, 4)

    # 1) fused single-kernel path (one spatial block per sample).
    N, C, H, W = 2, 64, 16, 16                                 # ratio=16 -> hidden=4
    x = jax.random.normal(kx1, (N, C, H, W), dtype=jnp.float32)
    model = ChannelAttention(C, ratio=16, key=kp1)
    ref = _ref_forward(x, model.w1, model.w2)
    y = jax.block_until_ready(model(x))
    assert y.shape == x.shape, y.shape
    assert jnp.allclose(y, ref, atol=1e-5, rtol=1e-5), float(jnp.max(jnp.abs(y - ref)))

    # 2) two-kernel tiled path (force tiny blocks; HW divisible by the block).
    y2 = jax.block_until_ready(
        channel_attention(x, model.w1, model.w2, block_budget_bytes=C * 128 * 4))
    assert jnp.allclose(y2, ref, atol=1e-5, rtol=1e-5)

    # 3) ragged spatial extent (HW=144, not a multiple of 128): fused remainder
    #    store, and masked multi-block reduction when forced to tile.
    N3, C3, H3, W3 = 2, 8, 12, 12                              # ratio=4 -> hidden=2
    x3 = jax.random.normal(kx2, (N3, C3, H3, W3), dtype=jnp.float32)
    model3 = ChannelAttention(C3, ratio=4, key=kp2)
    ref3 = _ref_forward(x3, model3.w1, model3.w2)
    y3a = jax.block_until_ready(model3(x3))
    y3b = jax.block_until_ready(
        channel_attention(x3, model3.w1, model3.w2, block_budget_bytes=C3 * 128 * 4))
    assert jnp.allclose(y3a, ref3, atol=1e-5, rtol=1e-5)
    assert jnp.allclose(y3b, ref3, atol=1e-5, rtol=1e-5)

    print("KERNEL_OK")
</pallas_src>

<mosaic_0001>
module attributes {stable_mosaic.version = 11 : i64} {
  func.func @fused_kernel(%arg0: i32, %arg1: memref<1x64x256xf32, #tpu.memory_space<vmem>>, %arg2: memref<4x64xf32, #tpu.memory_space<vmem>>, %arg3: memref<64x4xf32, #tpu.memory_space<vmem>>, %arg4: memref<1x64x256xf32, #tpu.memory_space<vmem>>) attributes {dimension_semantics = [#tpu.dimension_semantics<parallel>], iteration_bounds = array<i64: 2>, scalar_prefetch = 0 : i64, scratch_operands = 0 : i64, tpu.core_type = #tpu.core_type<tc>, window_params = [{transform_indices = @transform_0, window_bounds = array<i64: 1, 64, 256>}, {pipeline_mode = #tpu.pipeline_mode<synchronous>, transform_indices = @transform_1, window_bounds = array<i64: 4, 64>}, {pipeline_mode = #tpu.pipeline_mode<synchronous>, transform_indices = @transform_2, window_bounds = array<i64: 64, 4>}, {transform_indices = @transform_3, window_bounds = array<i64: 1, 64, 256>}]} {
    %c0 = arith.constant 0 : index
    %c0_0 = arith.constant 0 : index
    %c0_1 = arith.constant 0 : index
    %0 = vector.load %arg1[%c0, %c0_0, %c0_1] : memref<1x64x256xf32, #tpu.memory_space<vmem>>, vector<1x64x256xf32>
    %1 = vector.shape_cast %0 : vector<1x64x256xf32> to vector<64x256xf32>
    %cst = arith.constant dense<0.000000e+00> : vector<64xf32>
    %2 = vector.multi_reduction <add>, %1, %cst [1] : vector<64x256xf32> to vector<64xf32>
    %3 = vector.shape_cast %2 : vector<64xf32> to vector<64x1xf32>
    %cst_2 = arith.constant dense<0xFF800000> : vector<64xf32>
    %4 = vector.multi_reduction <maximumf>, %1, %cst_2 [1] : vector<64x256xf32> to vector<64xf32>
    %5 = vector.shape_cast %4 : vector<64xf32> to vector<64x1xf32>
    %cst_3 = arith.constant 3.906250e-03 : f32
    %6 = vector.broadcast %cst_3 : f32 to vector<64x1xf32>
    %7 = arith.mulf %3, %6 : vector<64x1xf32>
    %c0_4 = arith.constant 0 : index
    %c0_5 = arith.constant 0 : index
    %8 = vector.load %arg2[%c0_4, %c0_5] : memref<4x64xf32, #tpu.memory_space<vmem>>, vector<4x64xf32>
    %c0_6 = arith.constant 0 : index
    %c0_7 = arith.constant 0 : index
    %9 = vector.load %arg3[%c0_6, %c0_7] : memref<64x4xf32, #tpu.memory_space<vmem>>, vector<64x4xf32>
    %10 = tpu.iota {dimensions = array<i32: 1>} : vector<64x2xi32>
    %c0_i32 = arith.constant 0 : i32
    %11 = vector.broadcast %c0_i32 : i32 to vector<64x2xi32>
    %12 = arith.cmpi eq, %10, %11 : vector<64x2xi32>
    %13 = vector.shape_cast %7 : vector<64x1xf32> to vector<64x1xf32>
    %14 = vector.broadcast %13 : vector<64x1xf32> to vector<64x2xf32>
    %15 = vector.shape_cast %5 : vector<64x1xf32> to vector<64x1xf32>
    %16 = vector.broadcast %15 : vector<64x1xf32> to vector<64x2xf32>
    %17 = arith.select %12, %14, %16 : vector<64x2xi1>, vector<64x2xf32>
    %cst_8 = arith.constant dense<0.000000e+00> : vector<4x2xf32>
    %18 = tpu.matmul %8, %17, %cst_8 {dimension_numbers = #tpu.dot_dimension_numbers<[1], [0], [0], [1], [0, 0, 1, 1], [], []>} : vector<4x64xf32>, vector<64x2xf32>, vector<4x2xf32> -> vector<4x2xf32>
    %cst_9 = arith.constant 0.000000e+00 : f32
    %19 = vector.broadcast %cst_9 : f32 to vector<4x2xf32>
    %20 = arith.cmpf oge, %18, %19 : vector<4x2xf32>
    %cst_10 = arith.constant 1.000000e-01 : f32
    %21 = vector.broadcast %cst_10 : f32 to vector<4x2xf32>
    %22 = arith.mulf %21, %18 : vector<4x2xf32>
    %23 = arith.select %20, %18, %22 : vector<4x2xi1>, vector<4x2xf32>
    %cst_11 = arith.constant dense<0.000000e+00> : vector<64x2xf32>
    %24 = tpu.matmul %9, %23, %cst_11 {dimension_numbers = #tpu.dot_dimension_numbers<[1], [0], [0], [1], [0, 0, 1, 1], [], []>} : vector<64x4xf32>, vector<4x2xf32>, vector<64x2xf32> -> vector<64x2xf32>
    %cst_12 = arith.constant dense<0.000000e+00> : vector<64xf32>
    %25 = vector.multi_reduction <add>, %24, %cst_12 [1] : vector<64x2xf32> to vector<64xf32>
    %26 = vector.shape_cast %25 : vector<64xf32> to vector<64x1xf32>
    %cst_13 = arith.constant 0.000000e+00 : f32
    %27 = vector.broadcast %cst_13 : f32 to vector<64x1xf32>
    %28 = arith.subf %27, %26 : vector<64x1xf32>
    %29 = math.exp %28 : vector<64x1xf32>
    %cst_14 = arith.constant 1.000000e+00 : f32
    %30 = vector.broadcast %cst_14 : f32 to vector<64x1xf32>
    %31 = arith.addf %30, %29 : vector<64x1xf32>
    %cst_15 = arith.constant 1.000000e+00 : f32
    %32 = vector.broadcast %cst_15 : f32 to vector<64x1xf32>
    %33 = arith.divf %32, %31 : vector<64x1xf32>
    %34 = vector.shape_cast %33 : vector<64x1xf32> to vector<64x1xf32>
    %35 = vector.broadcast %34 : vector<64x1xf32> to vector<64x128xf32>
    %c0_i32_16 = arith.constant 0 : i32
    %c0_i32_17 = arith.constant 0 : i32
    %c2_i32 = arith.constant 2 : i32
    %36 = arith.addi %c0_i32_17, %c2_i32 : i32
    %c1_i32 = arith.constant 1 : i32
    scf.for %arg5 = %c0_i32_17 to %36 step %c1_i32  : i32 {
      %c1_i32_19 = arith.constant 1 : i32
      %37 = arith.muli %arg5, %c1_i32_19 : i32
      %c0_i32_20 = arith.constant 0 : i32
      %38 = arith.addi %c0_i32_20, %37 : i32
      %c128_i32 = arith.constant 128 : i32
      %39 = arith.muli %38, %c128_i32 : i32
      %40 = tpu.assume_multiple %39, 128 : i32
      %c0_i32_21 = arith.constant 0 : i32
      %c0_i32_22 = arith.constant 0 : i32
      %41 = tpu.memref_slice %arg4[%c0_i32_16, %c0_i32_21, %c0_i32_22] : memref<1x64x256xf32, #tpu.memory_space<vmem>> -> memref<1x64x256xf32, #tpu.memory_space<vmem>>
      %42 = tpu.memref_squeeze %41 : memref<1x64x256xf32, #tpu.memory_space<vmem>> -> memref<64x256xf32, #tpu.memory_space<vmem>>
      %c0_23 = arith.constant 0 : index
      %43 = arith.index_cast %40 : i32 to index
      %44 = vector.load %42[%c0_23, %43] : memref<64x256xf32, #tpu.memory_space<vmem>>, vector<64x128xf32>
      tpu.vector_store %42[%c0_23, %43], %35 {strides = array<i32>} : memref<64x256xf32, #tpu.memory_space<vmem>>, vector<64x128xf32>,
    }
    %c2_i32_18 = arith.constant 2 : i32
    return
  }
  func.func @transform_0(%arg0: i32) -> (i32, i32, i32) {
    %c0_i32 = arith.constant 0 : i32
    %c0_i32_0 = arith.constant 0 : i32
    %c0_i32_1 = arith.constant 0 : i32
    return %arg0, %c0_i32, %c0_i32_0 : i32, i32, i32
  }
  func.func @transform_1(%arg0: i32) -> (i32, i32) {
    %c0_i32 = arith.constant 0 : i32
    %c0_i32_0 = arith.constant 0 : i32
    %c0_i32_1 = arith.constant 0 : i32
    return %c0_i32, %c0_i32_0 : i32, i32
  }
  func.func @transform_2(%arg0: i32) -> (i32, i32) {
    %c0_i32 = arith.constant 0 : i32
    %c0_i32_0 = arith.constant 0 : i32
    %c0_i32_1 = arith.constant 0 : i32
    return %c0_i32, %c0_i32_0 : i32, i32
  }
  func.func @transform_3(%arg0: i32) -> (i32, i32, i32) {
    %c0_i32 = arith.constant 0 : i32
    %c0_i32_0 = arith.constant 0 : i32
    %c0_i32_1 = arith.constant 0 : i32
    return %arg0, %c0_i32, %c0_i32_0 : i32, i32, i32
  }
}

</mosaic_0001>

<llo_original>
// kernel: tpu_custom_call.1
$region0: #{tpu_custom_call.1}
  #allocation0 [shape = 'u32[]', space=smem, size = 0x4, offset = 0x4, fixed_abs, tag = 'smem constant byte address 0x4 - core index']
  #allocation1 [shape = 'u32[72,128]{1,0:T(1,128)}', space=vmem, size = 0x9000, scoped, tag = 'internal scratch']
  %s0 = inlined_call_operand.hbm [shape: f32[2,64,256], index: 0, kind: input, shape index: {}]
  %s1 = inlined_call_operand.vmem [shape: f32[4,64], index: 1, kind: input, shape index: {}]
  %s2 = inlined_call_operand.vmem [shape: f32[64,4], index: 2, kind: input, shape index: {}]
  %s3 = inlined_call_operand.hbm [shape: f32[2,64,256], index: 3, kind: output, shape index: {}]
  %s4 = sld [smem:[#allocation0]]
  $region56: #{tpu_custom_call.1} parent=0
    _
  %s6 = ssub.s32 1, %s4
  %s7 = scalar_select 0, %s6, %s4
  $region1: #{tpu_custom_call.1} parent=0
    #allocation2 [shape = 'u8[131072]{0}', space=vmem, size = 0x20000, scoped, tag = 'input window, operand 0']
    #allocation3 [shape = 's32[2]{0}', space=sflag, size = 0x8, scoped, tag = 'scoped memory for tpu_custom_call.1']
    #allocation4 [shape = 's32[2]{0}', space=sflag, size = 0x8, scoped, tag = 'scoped memory for tpu_custom_call.1']
    #allocation5 [shape = 'u8[131072]{0}', space=vmem, size = 0x20000, scoped, tag = 'output window, operand 0']
    %8 = vsyncpa [#allocation3], 0
    %s9 = scalar_lea.sflag [#allocation3], 1
    %10 = vsyncpa %s9, 0
    %11 = vsyncpa [#allocation4], 0
    %s12 = scalar_lea.sflag [#allocation4], 1
    %13 = vsyncpa %s12, 0
    loop: start=0, step=1, limit=4
    $region2: #{tpu_custom_call.1} parent=1 // loop_pre_header
      _
    $region3: #{tpu_custom_call.1} parent=1 // loop_header
      %s15 = sphi 0, %s19
      %p16 = scmp.ge.s32.totalorder %s15, 4
      %s25 = sphi 0, %s27
      %s28 = sphi 0, %s25
      %s29 = sphi 0, %s28
      %s45 = sphi 0, %s29
      %s49 = sphi 0, %s49
      %s51 = sphi 0, %s49
      %s52 = sphi 0, %s51
      %s66 = sphi 0, %s52
      %s70 = sphi 0, %s70
      %s72 = sphi 0, %s70
      %s73 = sphi 0, %s72
      %s87 = sphi 0, %s73
      %s93 = sphi 0, %s95
      %s96 = sphi 0, %s93
      %s97 = sphi 0, %s96
      %s113 = sphi 0, %s97
    $region4: #{tpu_custom_call.1} parent=1 // loop_header_branch
      %18 = sbr.rel (%p16) target = $region8
    $region5: #{tpu_custom_call.1} parent=1 // loop_body
      %s20 = ssub.s32 %s15, 1
      %s21 = ssub.s32 %s15, 2
      %s22 = sadd.s32 %s15, 1
      %s23 = ssub.s32 %s15, %s22
      %p24 = scmp.eq.s32.totalorder %s23, 0
      %s26 = sadd.s32 %s25, 1
      %s27 = scalar_select %p24, %s25, %s26
      %p30 = pneg %p24
      %p31 = scmp.eq.s32.totalorder %s15, 1
      %p32 = por %p30, %p31
      %p33 = scmp.ne.s32.totalorder %s25, %s28
      %p34 = scmp.eq.s32.totalorder %s15, 0
      %p35 = por %p33, %p34
      %p36 = scmp.ne.s32.totalorder %s25, %s28
      %p37 = scmp.eq.s32.totalorder %s20, 1
      %p38 = por %p36, %p37
      %p39 = scmp.ne.s32.totalorder %s28, %s29
      %p40 = scmp.eq.s32.totalorder %s20, 0
      %p41 = por %p39, %p40
      %p42 = scmp.ne.s32.totalorder %s28, %s29
      %p43 = scmp.eq.s32.totalorder %s21, 1
      %p44 = por %p42, %p43
      %p46 = scmp.ne.s32.totalorder %s29, %s45
      %p47 = scmp.eq.s32.totalorder %s21, 0
      %p48 = por %p46, %p47
      %s50 = sadd.s32 %s49, 1
      %p53 = scmp.eq.s32.totalorder %s15, 1
      %p54 = scmp.ne.s32.totalorder %s49, %s51
      %p55 = scmp.eq.s32.totalorder %s15, 0
      %p56 = por %p54, %p55
      %p57 = scmp.ne.s32.totalorder %s49, %s51
      %p58 = scmp.eq.s32.totalorder %s20, 1
      %p59 = por %p57, %p58
      %p60 = scmp.ne.s32.totalorder %s51, %s52
      %p61 = scmp.eq.s32.totalorder %s20, 0
      %p62 = por %p60, %p61
      %p63 = scmp.ne.s32.totalorder %s51, %s52
      %p64 = scmp.eq.s32.totalorder %s21, 1
      %p65 = por %p63, %p64
      %p67 = scmp.ne.s32.totalorder %s52, %s66
      %p68 = scmp.eq.s32.totalorder %s21, 0
      %p69 = por %p67, %p68
      %s71 = sadd.s32 %s70, 1
      %p74 = scmp.eq.s32.totalorder %s15, 1
      %p75 = scmp.ne.s32.totalorder %s70, %s72
      %p76 = scmp.eq.s32.totalorder %s15, 0
      %p77 = por %p75, %p76
      %p78 = scmp.ne.s32.totalorder %s70, %s72
      %p79 = scmp.eq.s32.totalorder %s20, 1
      %p80 = por %p78, %p79
      %p81 = scmp.ne.s32.totalorder %s72, %s73
      %p82 = scmp.eq.s32.totalorder %s20, 0
      %p83 = por %p81, %p82
      %p84 = scmp.ne.s32.totalorder %s72, %s73
      %p85 = scmp.eq.s32.totalorder %s21, 1
      %p86 = por %p84, %p85
      %p88 = scmp.ne.s32.totalorder %s73, %s87
      %p89 = scmp.eq.s32.totalorder %s21, 0
      %p90 = por %p88, %p89
      %s91 = ssub.s32 %s15, %s22
      %p92 = scmp.eq.s32.totalorder %s91, 0
      %s94 = sadd.s32 %s93, 1
      %s95 = scalar_select %p92, %s93, %s94
      %p98 = pneg %p92
      %p99 = scmp.eq.s32.totalorder %s15, 1
      %p100 = por %p98, %p99
      %p101 = scmp.ne.s32.totalorder %s93, %s96
      %p102 = scmp.eq.s32.totalorder %s15, 0
      %p103 = por %p101, %p102
      %p104 = scmp.ne.s32.totalorder %s93, %s96
      %p105 = scmp.eq.s32.totalorder %s20, 1
      %p106 = por %p104, %p105
      %p107 = scmp.ne.s32.totalorder %s96, %s97
      %p108 = scmp.eq.s32.totalorder %s20, 0
      %p109 = por %p107, %p108
      %p110 = scmp.ne.s32.totalorder %s96, %s97
      %p111 = scmp.eq.s32.totalorder %s21, 1
      %p112 = por %p110, %p111
      %p114 = scmp.ne.s32.totalorder %s97, %s113
      %p115 = scmp.eq.s32.totalorder %s21, 0
      %p116 = por %p114, %p115
      %p117 = scmp.le.s32.totalorder 1, %s15
      %p118 = scmp.lt.s32.totalorder %s15, 3
      %p119 = pnand %p117, %p118
      %p120 = pneg %p119
      // Predicated region
      $region9: #{tpu_custom_call.1} parent=5 // pred_check
        _
      $region10: #{tpu_custom_call.1} parent=5 // pred_check_branch
        %122 = sbr.rel (%p119) target = $region12
      $region11: #{tpu_custom_call.1} parent=5 // pred_region
        %s123 = ssub.s32 %s15, 1
        // Predicated region
        $region13: #{tpu_custom_call.1} parent=11 // pred_check
          %p124 = pneg %p62
        $region14: #{tpu_custom_call.1} parent=11 // pred_check_branch
          %126 = sbr.rel (%p124) target = $region16
        $region15: #{tpu_custom_call.1} parent=11 // pred_region
          _
        $region16: #{tpu_custom_call.1} parent=11 // pred_fallthru
          _
        // Predicated region
        $region17: #{tpu_custom_call.1} parent=11 // pred_check
          %p127 = pneg %p83
        $region18: #{tpu_custom_call.1} parent=11 // pred_check_branch
          %129 = sbr.rel (%p127) target = $region20
        $region19: #{tpu_custom_call.1} parent=11 // pred_region
          _
        $region20: #{tpu_custom_call.1} parent=11 // pred_fallthru
          _
      $region12: #{tpu_custom_call.1} parent=5 // pred_fallthru
        _
      %p130 = scmp.lt.s32.totalorder %s15, 2
      // Predicated region
      $region21: #{tpu_custom_call.1} parent=5 // pred_check
        %p131 = pneg %p130
      $region22: #{tpu_custom_call.1} parent=5 // pred_check_branch
        %133 = sbr.rel (%p131) target = $region24
      $region23: #{tpu_custom_call.1} parent=5 // pred_region
        // Predicated region
        $region25: #{tpu_custom_call.1} parent=23 // pred_check
          %p134 = pneg %p35
        $region26: #{tpu_custom_call.1} parent=23 // pred_check_branch
          %136 = sbr.rel (%p134) target = $region28
        $region27: #{tpu_custom_call.1} parent=23 // pred_region
          %s137 = sand.u32 %s25, 1
          %s138 = scalar_lea.sflag [#allocation3], %s137
          %s139 = sand.u32 %s25, 1
          %s140 = smul.addr %s139, 128
          %s141 = scalar_lea.vmem [#allocation2], %s140
          %143 = vsyncadd %s138, 0
          %s144 = smul.addr %s15, 16
          %s145 = smul.addr %s144, 8
          %s146 = scalar_lea.hbm %s0, %s145
          %s147 = sshll.u32 %s146, 4
          %s148 = int_to_ptr.hbm [resolvable:$true] %s147
          %s149 = sshll.u32 %s141, 4
          %s150 = int_to_ptr.vmem [resolvable:$true] %s149
          %155 = dma.hbm_to_vmem [thread:$0]  %s148, 2048, %s150, %s138, 256, 256, 16
        $region28: #{tpu_custom_call.1} parent=23 // pred_fallthru
          _
      $region24: #{tpu_custom_call.1} parent=5 // pred_fallthru
        _
      %p156 = scmp.le.s32.totalorder 1, %s15
      %p157 = scmp.lt.s32.totalorder %s15, 3
      %p158 = pnand %p156, %p157
      %p159 = pneg %p158
      // Predicated region
      $region29: #{tpu_custom_call.1} parent=5 // pred_check
        _
      $region30: #{tpu_custom_call.1} parent=5 // pred_check_branch
        %161 = sbr.rel (%p158) target = $region32
      $region31: #{tpu_custom_call.1} parent=5 // pred_region
        %s162 = ssub.s32 %s15, 1
        %s163 = sand.u32 %s28, 1
        %s164 = scalar_lea.sflag [#allocation3], %s163
        %s165 = sand.u32 %s28, 1
        %s166 = smul.addr %s165, 128
        %s167 = scalar_lea.vmem [#allocation2], %s166
        // Predicated region
        $region33: #{tpu_custom_call.1} parent=31 // pred_check
          %p168 = pneg %p41
        $region34: #{tpu_custom_call.1} parent=31 // pred_check_branch
          %170 = sbr.rel (%p168) target = $region36
        $region35: #{tpu_custom_call.1} parent=31 // pred_region
          %172 = dma.done %s164, 2048
        $region36: #{tpu_custom_call.1} parent=31 // pred_fallthru
          _
        %s173 = sand.u32 %s28, 1
        %s174 = scalar_lea.sflag [#allocation3], %s173
        %s175 = sand.u32 %s28, 1
        %s176 = smul.addr %s175, 128
        %s177 = scalar_lea.vmem [#allocation2], %s176
        %p178 = pneg %p41
        %p179 = pneg %p38
        %p180 = pneg %p62
        %p181 = pneg %p59
        %p182 = pneg %p83
        %p183 = pneg %p80
        %p184 = pneg %p109
        %p185 = pneg %p106
        %s186 = sand.u32 %s96, 1
        %s187 = scalar_lea.sflag [#allocation4], %s186
        %s188 = sand.u32 %s96, 1
        %s189 = smul.addr %s188, 128
        %s190 = scalar_lea.vmem [#allocation5], %s189
        %v191 = vld [vmem:[%s167] sm:$0xff]
        %v192 = vld [vmem:[%s167 + $0x8] sm:$0xff]
        %v193 = vld [vmem:[%s167 + $0x10] sm:$0xff]
        %v194 = vld [vmem:[%s167 + $0x18] sm:$0xff]
        %v195 = vld [vmem:[%s167 + $0x20] sm:$0xff]
        %v196 = vld [vmem:[%s167 + $0x28] sm:$0xff]
        %v197 = vld [vmem:[%s167 + $0x30] sm:$0xff]
        %v198 = vld [vmem:[%s167 + $0x38] sm:$0xff]
        %v199 = vld [vmem:[%s167 + $0x40] sm:$0xff]
        %v200 = vld [vmem:[%s167 + $0x48] sm:$0xff]
        %v201 = vld [vmem:[%s167 + $0x50] sm:$0xff]
        %v202 = vld [vmem:[%s167 + $0x58] sm:$0xff]
        %v203 = vld [vmem:[%s167 + $0x60] sm:$0xff]
        %v204 = vld [vmem:[%s167 + $0x68] sm:$0xff]
        %v205 = vld [vmem:[%s167 + $0x70] sm:$0xff]
        %v206 = vld [vmem:[%s167 + $0x78] sm:$0xff]
        %v207 = vadd.f32 %v191, %v192
        %208 = vadd.xlane.f32.xlu0 %v207
        %v209 = vpop.xlane.xlu0 %208
        %v210 = vadd.f32 %v193, %v194
        %211 = vadd.xlane.f32.xlu0 %v210
        %v212 = vpop.xlane.xlu0 %211
        %v213 = vadd.f32 %v195, %v196
        %214 = vadd.xlane.f32.xlu0 %v213
        %v215 = vpop.xlane.xlu0 %214
        %v216 = vadd.f32 %v197, %v198
        %217 = vadd.xlane.f32.xlu0 %v216
        %v218 = vpop.xlane.xlu0 %217
        %v219 = vadd.f32 %v199, %v200
        %220 = vadd.xlane.f32.xlu0 %v219
        %v221 = vpop.xlane.xlu0 %220
        %v222 = vadd.f32 %v201, %v202
        %223 = vadd.xlane.f32.xlu0 %v222
        %v224 = vpop.xlane.xlu0 %223
        %v225 = vadd.f32 %v203, %v204
        %226 = vadd.xlane.f32.xlu0 %v225
        %v227 = vpop.xlane.xlu0 %226
        %v228 = vadd.f32 %v205, %v206
        %229 = vadd.xlane.f32.xlu0 %v228
        %v230 = vpop.xlane.xlu0 %229
        %v231 = vmax.f32 %v191, %v192
        %232 = vmax.xlane.f32.xlu0 %v231
        %v233 = vpop.xlane.xlu0 %232
        %v234 = vmax.f32 %v193, %v194
        %235 = vmax.xlane.f32.xlu0 %v234
        %v236 = vpop.xlane.xlu0 %235
        %v237 = vmax.f32 %v195, %v196
        %238 = vmax.xlane.f32.xlu0 %v237
        %v239 = vpop.xlane.xlu0 %238
        %v240 = vmax.f32 %v197, %v198
        %241 = vmax.xlane.f32.xlu0 %v240
        %v242 = vpop.xlane.xlu0 %241
        %v243 = vmax.f32 %v199, %v200
        %244 = vmax.xlane.f32.xlu0 %v243
        %v245 = vpop.xlane.xlu0 %244
        %v246 = vmax.f32 %v201, %v202
        %247 = vmax.xlane.f32.xlu0 %v246
        %v248 = vpop.xlane.xlu0 %247
        %v249 = vmax.f32 %v203, %v204
        %250 = vmax.xlane.f32.xlu0 %v249
        %v251 = vpop.xlane.xlu0 %250
        %v252 = vmax.f32 %v205, %v206
        %253 = vmax.xlane.f32.xlu0 %v252
        %v254 = vpop.xlane.xlu0 %253
        %v255 = vmul.f32 %v209, 0.00390625
        %v256 = vmul.f32 %v212, 0.00390625
        %v257 = vmul.f32 %v215, 0.00390625
        %v258 = vmul.f32 %v218, 0.00390625
        %v259 = vmul.f32 %v221, 0.00390625
        %v260 = vmul.f32 %v224, 0.00390625
        %v261 = vmul.f32 %v227, 0.00390625
        %v262 = vmul.f32 %v230, 0.00390625
        %v263 = vld [vmem:[%s1] sm:$0xf]
        %v264 = vld [vmem:[%s2] sm:$0xff]
        %v265 = vld [vmem:[%s2 + $0x8] sm:$0xff]
        %v266 = vld [vmem:[%s2 + $0x10] sm:$0xff]
        %v267 = vld [vmem:[%s2 + $0x18] sm:$0xff]
        %v268 = vld [vmem:[%s2 + $0x20] sm:$0xff]
        %v269 = vld [vmem:[%s2 + $0x28] sm:$0xff]
        %v270 = vld [vmem:[%s2 + $0x30] sm:$0xff]
        %v271 = vld [vmem:[%s2 + $0x38] sm:$0xff]
        %v272 = vlaneseq
        %v273 = vand.u32 %v272, 127
        %vm274 = vcmp.eq.s32.totalorder %v273, 0
        %v275 = vsel %vm274, %v255, %v233
        %v276 = vsel %vm274, %v256, %v236
        %v277 = vsel %vm274, %v257, %v239
        %v278 = vsel %vm274, %v258, %v242
        %v279 = vsel %vm274, %v259, %v245
        %v280 = vsel %vm274, %v260, %v248
        %v281 = vsel %vm274, %v261, %v251
        %v282 = vsel %vm274, %v262, %v254
        %vm283 = vcmask 523264
        %v285 = vsel %vm283, %v263, 0
        %287 = vmatpush.msra.mxu0 0.0
        %288 = vmatpush.msra.mxu0 0.0
        %289 = vmatpush.msra.mxu0 0.0
        %290 = vmatpush.msra.mxu0 0.0
        %291 = vmatpush.msra.mxu0 0.0
        %292 = vmatpush.msra.mxu0 0.0
        %293 = vmatpush.msra.mxu0 0.0
        %294 = vmatpush.msra.mxu0 0.0
        %295 = vmatpush.msra.mxu0 %v282
        %296 = vmatpush.msra.mxu0 %v281
        %297 = vmatpush.msra.mxu0 %v280
        %298 = vmatpush.msra.mxu0 %v279
        %299 = vmatpush.msra.mxu0 %v278
        %300 = vmatpush.msra.mxu0 %v277
        %301 = vmatpush.msra.mxu0 %v276
        %302 = vmatpush.msra.mxu0 %v275
        %303 = vmatmul.f32.gmra.mxu0 %v285
        %v304 = vpop.f32.mrf.mxu0
        %v305 = vadd.f32 0.0, %v304
        %306 = vdwg.mxu0
        %vm307 = vcmp.ge.f32.partialorder %v305, 0.0
        %v308 = vmul.f32 %v305, 0.1
        %v309 = vsel %vm307, %v305, %v308
        %vm310 = vcmask 31744
        %v312 = vsel %vm310, %v264, 0
        %v315 = vsel %vm310, %v265, 0
        %v318 = vsel %vm310, %v266, 0
        %v321 = vsel %vm310, %v267, 0
        %v324 = vsel %vm310, %v268, 0
        %v327 = vsel %vm310, %v269, 0
        %v330 = vsel %vm310, %v270, 0
        %v333 = vsel %vm310, %v271, 0
        %vm335 = vcmask 1043456
        %v337 = vsel %vm335, %v309, 0
        %339 = vmatpush.msra.mxu0 0.0
        %340 = vmatpush.msra.mxu0 0.0
        %341 = vmatpush.msra.mxu0 0.0
        %342 = vmatpush.msra.mxu0 0.0
        %343 = vmatpush.msra.mxu0 0.0
        %344 = vmatpush.msra.mxu0 0.0
        %345 = vmatpush.msra.mxu0 0.0
        %346 = vmatpush.msra.mxu0 0.0
        %347 = vmatpush.msra.mxu0 0.0
        %348 = vmatpush.msra.mxu0 0.0
        %349 = vmatpush.msra.mxu0 0.0
        %350 = vmatpush.msra.mxu0 0.0
        %351 = vmatpush.msra.mxu0 0.0
        %352 = vmatpush.msra.mxu0 0.0
        %353 = vmatpush.msra.mxu0 0.0
        %354 = vmatpush.msra.mxu0 %v337
        %355 = vmatmul.f32.gmra.mxu0 %v312
        %v356 = vpop.f32.mrf.mxu0
        %v357 = vadd.f32 0.0, %v356
        %358 = vmatmul.f32.gmra.mxu0 %v315
        %v359 = vpop.f32.mrf.mxu0
        %v360 = vadd.f32 0.0, %v359
        %361 = vmatmul.f32.gmra.mxu0 %v318
        %v362 = vpop.f32.mrf.mxu0
        %v363 = vadd.f32 0.0, %v362
        %364 = vmatmul.f32.gmra.mxu0 %v321
        %v365 = vpop.f32.mrf.mxu0
        %v366 = vadd.f32 0.0, %v365
        %367 = vmatmul.f32.gmra.mxu0 %v324
        %v368 = vpop.f32.mrf.mxu0
        %v369 = vadd.f32 0.0, %v368
        %370 = vmatmul.f32.gmra.mxu0 %v327
        %v371 = vpop.f32.mrf.mxu0
        %v372 = vadd.f32 0.0, %v371
        %373 = vmatmul.f32.gmra.mxu0 %v330
        %v374 = vpop.f32.mrf.mxu0
        %v375 = vadd.f32 0.0, %v374
        %376 = vmatmul.f32.gmra.mxu0 %v333
        %v377 = vpop.f32.mrf.mxu0
        %v378 = vadd.f32 0.0, %v377
        %379 = vdwg.mxu0
        %vm380 = vcmask 15360
        %v381 = vsel %vm380, %v357, 0.0
        %382 = vadd.xlane.f32.xlu0 %v381
        %v383 = vpop.xlane.xlu0 %382
        %v384 = vsel %vm380, %v360, 0.0
        %385 = vadd.xlane.f32.xlu0 %v384
        %v386 = vpop.xlane.xlu0 %385
        %v387 = vsel %vm380, %v363, 0.0
        %388 = vadd.xlane.f32.xlu0 %v387
        %v389 = vpop.xlane.xlu0 %388
        %v390 = vsel %vm380, %v366, 0.0
        %391 = vadd.xlane.f32.xlu0 %v390
        %v392 = vpop.xlane.xlu0 %391
        %v393 = vsel %vm380, %v369, 0.0
        %394 = vadd.xlane.f32.xlu0 %v393
        %v395 = vpop.xlane.xlu0 %394
        %v396 = vsel %vm380, %v372, 0.0
        %397 = vadd.xlane.f32.xlu0 %v396
        %v398 = vpop.xlane.xlu0 %397
        %v399 = vsel %vm380, %v375, 0.0
        %400 = vadd.xlane.f32.xlu0 %v399
        %v401 = vpop.xlane.xlu0 %400
        %v402 = vsel %vm380, %v378, 0.0
        %403 = vadd.xlane.f32.xlu0 %v402
        %v404 = vpop.xlane.xlu0 %403
        %v405 = vsub.f32 0.0, %v383
        %v406 = vsub.f32 0.0, %v386
        %v407 = vsub.f32 0.0, %v389
        %v408 = vsub.f32 0.0, %v392
        %v409 = vsub.f32 0.0, %v395
        %v410 = vsub.f32 0.0, %v398
        %v411 = vsub.f32 0.0, %v401
        %v412 = vsub.f32 0.0, %v404
        %v413 = vmul.f32 %v405, 1.442695
        %v414 = vpow.pop %v413
        %v415 = vmul.f32 %v406, 1.442695
        %v416 = vpow.pop %v415
        %v417 = vmul.f32 %v407, 1.442695
        %v418 = vpow.pop %v417
        %v419 = vmul.f32 %v408, 1.442695
        %v420 = vpow.pop %v419
        %v421 = vmul.f32 %v409, 1.442695
        %v422 = vpow.pop %v421
        %v423 = vmul.f32 %v410, 1.442695
        %v424 = vpow.pop %v423
        %v425 = vmul.f32 %v411, 1.442695
        %v426 = vpow.pop %v425
        %v427 = vmul.f32 %v412, 1.442695
        %v428 = vpow.pop %v427
        %v429 = vadd.f32 %v414, 1.0
        %v430 = vadd.f32 %v416, 1.0
        %v431 = vadd.f32 %v418, 1.0
        %v432 = vadd.f32 %v420, 1.0
        %v433 = vadd.f32 %v422, 1.0
        %v434 = vadd.f32 %v424, 1.0
        %v435 = vadd.f32 %v426, 1.0
        %v436 = vadd.f32 %v428, 1.0
        %v437 = vrcp.pop %v429
        %v438 = vmul.f32 %v429, %v437
        %v439 = vsub.f32 1.0, %v438
        %v440 = vmul.f32 %v437, %v439
        %v441 = vadd.f32 %v437, %v440
        %vm442 = vweird.f32 %v429
        %vm443 = vweird.f32 %v437
        %vm444 = vmor %vm442, %vm443
        %v445 = vsel %vm444, %v437, %v441
        %v446 = vand.u32 2147483647, %v429
        %vm447 = vcmp.eq.f32.partialorder %v446, 8.507059e+37
        %v448 = vand.u32 %v429, 2147483648
        %v449 = vor.u32 1.1754944e-38, %v448
        %v450 = vsel %vm447, %v449, %v445
        %v451 = vmul.f32 1.0, %v450
        %v452 = vrcp.pop %v430
        %v453 = vmul.f32 %v430, %v452
        %v454 = vsub.f32 1.0, %v453
        %v455 = vmul.f32 %v452, %v454
        %v456 = vadd.f32 %v452, %v455
        %vm457 = vweird.f32 %v430
        %vm458 = vweird.f32 %v452
        %vm459 = vmor %vm457, %vm458
        %v460 = vsel %vm459, %v452, %v456
        %v461 = vand.u32 2147483647, %v430
        %vm462 = vcmp.eq.f32.partialorder %v461, 8.507059e+37
        %v463 = vand.u32 %v430, 2147483648
        %v464 = vor.u32 1.1754944e-38, %v463
        %v465 = vsel %vm462, %v464, %v460
        %v466 = vmul.f32 1.0, %v465
        %v467 = vrcp.pop %v431
        %v468 = vmul.f32 %v431, %v467
        %v469 = vsub.f32 1.0, %v468
        %v470 = vmul.f32 %v467, %v469
        %v471 = vadd.f32 %v467, %v470
        %vm472 = vweird.f32 %v431
        %vm473 = vweird.f32 %v467
        %vm474 = vmor %vm472, %vm473
        %v475 = vsel %vm474, %v467, %v471
        %v476 = vand.u32 2147483647, %v431
        %vm477 = vcmp.eq.f32.partialorder %v476, 8.507059e+37
        %v478 = vand.u32 %v431, 2147483648
        %v479 = vor.u32 1.1754944e-38, %v478
        %v480 = vsel %vm477, %v479, %v475
        %v481 = vmul.f32 1.0, %v480
        %v482 = vrcp.pop %v432
        %v483 = vmul.f32 %v432, %v482
        %v484 = vsub.f32 1.0, %v483
        %v485 = vmul.f32 %v482, %v484
        %v486 = vadd.f32 %v482, %v485
        %vm487 = vweird.f32 %v432
        %vm488 = vweird.f32 %v482
        %vm489 = vmor %vm487, %vm488
        %v490 = vsel %vm489, %v482, %v486
        %v491 = vand.u32 2147483647, %v432
        %vm492 = vcmp.eq.f32.partialorder %v491, 8.507059e+37
        %v493 = vand.u32 %v432, 2147483648
        %v494 = vor.u32 1.1754944e-38, %v493
        %v495 = vsel %vm492, %v494, %v490
        %v496 = vmul.f32 1.0, %v495
        %v497 = vrcp.pop %v433
        %v498 = vmul.f32 %v433, %v497
        %v499 = vsub.f32 1.0, %v498
        %v500 = vmul.f32 %v497, %v499
        %v501 = vadd.f32 %v497, %v500
        %vm502 = vweird.f32 %v433
        %vm503 = vweird.f32 %v497
        %vm504 = vmor %vm502, %vm503
        %v505 = vsel %vm504, %v497, %v501
        %v506 = vand.u32 2147483647, %v433
        %vm507 = vcmp.eq.f32.partialorder %v506, 8.507059e+37
        %v508 = vand.u32 %v433, 2147483648
        %v509 = vor.u32 1.1754944e-38, %v508
        %v510 = vsel %vm507, %v509, %v505
        %v511 = vmul.f32 1.0, %v510
        %v512 = vrcp.pop %v434
        %v513 = vmul.f32 %v434, %v512
        %v514 = vsub.f32 1.0, %v513
        %v515 = vmul.f32 %v512, %v514
        %v516 = vadd.f32 %v512, %v515
        %vm517 = vweird.f32 %v434
        %vm518 = vweird.f32 %v512
        %vm519 = vmor %vm517, %vm518
        %v520 = vsel %vm519, %v512, %v516
        %v521 = vand.u32 2147483647, %v434
        %vm522 = vcmp.eq.f32.partialorder %v521, 8.507059e+37
        %v523 = vand.u32 %v434, 2147483648
        %v524 = vor.u32 1.1754944e-38, %v523
        %v525 = vsel %vm522, %v524, %v520
        %v526 = vmul.f32 1.0, %v525
        %v527 = vrcp.pop %v435
        %v528 = vmul.f32 %v435, %v527
        %v529 = vsub.f32 1.0, %v528
        %v530 = vmul.f32 %v527, %v529
        %v531 = vadd.f32 %v527, %v530
        %vm532 = vweird.f32 %v435
        %vm533 = vweird.f32 %v527
        %vm534 = vmor %vm532, %vm533
        %v535 = vsel %vm534, %v527, %v531
        %v536 = vand.u32 2147483647, %v435
        %vm537 = vcmp.eq.f32.partialorder %v536, 8.507059e+37
        %v538 = vand.u32 %v435, 2147483648
        %v539 = vor.u32 1.1754944e-38, %v538
        %v540 = vsel %vm537, %v539, %v535
        %v541 = vmul.f32 1.0, %v540
        %v542 = vrcp.pop %v436
        %v543 = vmul.f32 %v436, %v542
        %v544 = vsub.f32 1.0, %v543
        %v545 = vmul.f32 %v542, %v544
        %v546 = vadd.f32 %v542, %v545
        %vm547 = vweird.f32 %v436
        %vm548 = vweird.f32 %v542
        %vm549 = vmor %vm547, %vm548
        %v550 = vsel %vm549, %v542, %v546
        %v551 = vand.u32 2147483647, %v436
        %vm552 = vcmp.eq.f32.partialorder %v551, 8.507059e+37
        %v553 = vand.u32 %v436, 2147483648
        %v554 = vor.u32 1.1754944e-38, %v553
        %v555 = vsel %vm552, %v554, %v550
        %v556 = vmul.f32 1.0, %v555
        loop: start=0, step=1, limit=2
        $region37: #{tpu_custom_call.1} parent=31 // loop_pre_header
          _
        $region38: #{tpu_custom_call.1} parent=31 // loop_header
          %s558 = sphi 0, %s562
          %p559 = scmp.ge.s32.totalorder %s558, 2
        $region39: #{tpu_custom_call.1} parent=31 // loop_header_branch
          %561 = sbr.rel (%p559) target = $region43
        $region40: #{tpu_custom_call.1} parent=31 // loop_body
          %s563 = smul.u32 %s558, 128
          %s564 = sshra.s32 %s563, 7
          %s565 = sand.u32 %s563, 127
          %s566 = smul.addr %s564, 8
          %s567 = scalar_lea.vmem %s190, %s566 [#allocation5]
          %568 = vst [vmem:[%s567] sm:$0xff] %v451
          %569 = vst [vmem:[%s567 + $0x10] sm:$0xff] %v466
          %570 = vst [vmem:[%s567 + $0x20] sm:$0xff] %v481
          %571 = vst [vmem:[%s567 + $0x30] sm:$0xff] %v496
          %572 = vst [vmem:[%s567 + $0x40] sm:$0xff] %v511
          %573 = vst [vmem:[%s567 + $0x50] sm:$0xff] %v526
          %574 = vst [vmem:[%s567 + $0x60] sm:$0xff] %v541
          %575 = vst [vmem:[%s567 + $0x70] sm:$0xff] %v556
        $region41: #{tpu_custom_call.1} parent=31 // loop_footer
          %s562 = sadd.s32 1, %s558
        $region42: #{tpu_custom_call.1} parent=31 // loop_footer_branch
          %557 = sbr.rel target = $region38
        $region43: #{tpu_custom_call.1} parent=31 // loop_exit
          _
        %s576 = sand.u32 %s96, 1
        %s577 = scalar_lea.sflag [#allocation4], %s576
        %s578 = sand.u32 %s96, 1
        %s579 = smul.addr %s578, 128
        %s580 = scalar_lea.vmem [#allocation5], %s579
        // Predicated region
        $region44: #{tpu_custom_call.1} parent=31 // pred_check
          %p581 = pneg %p106
        $region45: #{tpu_custom_call.1} parent=31 // pred_check_branch
          %583 = sbr.rel (%p581) target = $region47
        $region46: #{tpu_custom_call.1} parent=31 // pred_region
          %585 = vsyncadd %s577, 0
          %s586 = smul.addr %s20, 16
          %s587 = smul.addr %s586, 8
          %s588 = scalar_lea.hbm %s3, %s587
          %s589 = sshll.u32 %s580, 4
          %s590 = int_to_ptr.vmem [resolvable:$true] %s589
          %s591 = sshll.u32 %s588, 4
          %s592 = int_to_ptr.hbm [resolvable:$true] %s591
          %597 = dma.vmem_to_hbm [thread:$0]  %s590, 2048, %s592, %s577, 256, 256, 16
        $region47: #{tpu_custom_call.1} parent=31 // pred_fallthru
          _
      $region32: #{tpu_custom_call.1} parent=5 // pred_fallthru
        _
      %p598 = scmp.le.s32.totalorder 2, %s15
      // Predicated region
      $region48: #{tpu_custom_call.1} parent=5 // pred_check
        %p599 = pneg %p598
      $region49: #{tpu_custom_call.1} parent=5 // pred_check_branch
        %601 = sbr.rel (%p599) target = $region51
      $region50: #{tpu_custom_call.1} parent=5 // pred_region
        %s602 = ssub.s32 %s15, 2
        // Predicated region
        $region52: #{tpu_custom_call.1} parent=50 // pred_check
          %p603 = pneg %p112
        $region53: #{tpu_custom_call.1} parent=50 // pred_check_branch
          %605 = sbr.rel (%p603) target = $region55
        $region54: #{tpu_custom_call.1} parent=50 // pred_region
          %s606 = sand.u32 %s97, 1
          %s607 = scalar_lea.sflag [#allocation4], %s606
          %s608 = sand.u32 %s97, 1
          %s609 = smul.addr %s608, 128
          %s610 = scalar_lea.vmem [#allocation5], %s609
          %612 = dma.done %s607, 2048
        $region55: #{tpu_custom_call.1} parent=50 // pred_fallthru
          _
      $region51: #{tpu_custom_call.1} parent=5 // pred_fallthru
        _
    $region6: #{tpu_custom_call.1} parent=1 // loop_footer
      %s19 = sadd.s32 1, %s15
    $region7: #{tpu_custom_call.1} parent=1 // loop_footer_branch
      %14 = sbr.rel target = $region3
    $region8: #{tpu_custom_call.1} parent=1 // loop_exit
      _
    %613 = vsyncpa [#allocation3], 1
    %s614 = scalar_lea.sflag [#allocation3], 1
    %615 = vsyncpa %s614, 1
    %616 = vsyncpa [#allocation4], 1
    %s617 = scalar_lea.sflag [#allocation4], 1
    %618 = vsyncpa %s617, 1

</llo_original>
